<compile_context>
chip_gen: v7x
topology: tpu7x:2x2x1
jax: 0.10.0
libtpu: 0.0.40
codegen_flags: <defaults>
</compile_context>

<pallas_src>
import jax
import jax.numpy as jnp
from jax.experimental import pallas as pl
from jax.experimental.pallas import tpu as pltpu


def rope_kernel(x_ref, cos_ref, sin_ref, o_ref):
    # x_ref/o_ref: (TS, L) in x.dtype; cos_ref/sin_ref: (TS, L) f32.
    x = x_ref[...].astype(jnp.float32)
    lane_axis = x.ndim - 1          # positive axis index (pltpu/jnp roll both need >= 0)
    # Partner lane within each (2j, 2j+1) pair.  Wrap-around lanes of the rolls
    # are never selected (even lanes take x_next, odd lanes take x_prev), so the
    # circular wrap is harmless as long as L is even.
    x_next = jnp.roll(x, -1, axis=lane_axis)   # x[k+1], used on even lanes
    x_prev = jnp.roll(x, 1, axis=lane_axis)    # x[k-1], used on odd lanes
    lane = jax.lax.broadcasted_iota(jnp.int32, x.shape, lane_axis)
    partner = jnp.where((lane % 2) == 0, x_next, x_prev)
    # cos is duplicated per pair; sin is signed (-sin on even lanes, +sin on odd).
    o_ref[...] = (x * cos_ref[...] + partner * sin_ref[...]).astype(o_ref.dtype)


def _choose_lane_width(S, D):
    """Pick a lane-dense width L (multiple of 128) dividing S*D, else fall back to D."""
    if D % 128 == 0:
        return D
    total = S * D
    for L in (512, 384, 256, 128):
        if total % L == 0:
            return L
    return D  # fallback: block last dim equals full array dim (always legal)


def _choose_row_tile(R, L, x_itemsize, target_bytes=1_310_720):
    """Rows per tile: dtype-aware sublane multiple, ~<=target_bytes per f32 table tile."""
    pack = 8 * max(1, 4 // max(1, x_itemsize))   # 8 (f32), 16 (bf16), 32 (int8/fp8)
    if R <= pack:
        return R
    row_bytes = L * 4                            # f32 tables are the widest operand
    max_rows = max(pack, target_bytes // row_bytes)
    ts = min(R, (max_rows // pack) * pack)
    ts = max(ts, pack)
    # Prefer a tile that divides R exactly (avoids a ragged tail block).
    t = ts
    while t >= pack:
        if R % t == 0:
            return t
        t -= pack
    return ts  # non-divisor: cdiv grid + masked tail handled by Pallas


_TABLE_CACHE = {}


def _rope_tables(S, D, L):
    """f32 cos / signed-sin tables in the flattened (R, L) layout, memoized."""
    key = (int(S), int(D), int(L))
    tabs = _TABLE_CACHE.get(key)
    if tabs is None:
        token_idx = jnp.arange(S, dtype=jnp.float32)[:, None]          # (S, 1)
        positions = jnp.arange(0, D, 2, dtype=jnp.float32)[None, :]    # (1, D/2)
        theta = jnp.power(10000.0, -2.0 * positions / D)               # (1, D/2)
        angles = token_idx * theta                                     # (S, D/2)
        cos_half = jnp.cos(angles)
        sin_half = jnp.sin(angles)
        cos_full = jnp.repeat(cos_half, 2, axis=-1)                    # (S, D)
        sin_signed = jnp.stack([-sin_half, sin_half], axis=-1).reshape(S, D)
        R = (S * D) // L
        tabs = (cos_full.reshape(R, L), sin_signed.reshape(R, L))
        _TABLE_CACHE[key] = tabs
    return tabs


def rotary_embeddings(x):
    """Equivalent of RotaryEmbeddings.forward(x) for x of shape (B, S, D)."""
    B, S, D = x.shape
    assert D % 2 == 0, "RoPE requires an even embedding dimension"
    dtype = x.dtype
    itemsize = jnp.dtype(dtype).itemsize

    L = _choose_lane_width(S, D)
    R = (S * D) // L
    cos_tab, sin_tab = _rope_tables(S, D, L)

    # Free (contiguous) reshape to the lane-dense layout.
    x_flat = x.reshape(B, R, L)

    ts = _choose_row_tile(R, L, itemsize)
    n_row_tiles = pl.cdiv(R, ts)
    grid = (n_row_tiles, B)  # row-tile axis OUTER -> each table tile streamed once

    xo_spec = pl.BlockSpec((pl.Squeezed(), ts, L), lambda s, b: (b, s, 0))
    tbl_spec = pl.BlockSpec((ts, L), lambda s, b: (s, 0))

    if n_row_tiles > 1:
        # Force any megacore split onto the row axis so tables aren't fetched twice.
        dim_sem = ("parallel", "arbitrary")
    else:
        dim_sem = ("arbitrary", "parallel")

    out_flat = pl.pallas_call(
        rope_kernel,
        out_shape=jax.ShapeDtypeStruct((B, R, L), dtype),
        grid=grid,
        in_specs=[xo_spec, tbl_spec, tbl_spec],
        out_specs=xo_spec,
        compiler_params=pltpu.CompilerParams(
            dimension_semantics=dim_sem,
            vmem_limit_bytes=32 * 1024 * 1024),
        cost_estimate=pl.CostEstimate(
            flops=4 * B * S * D,
            transcendentals=0,
            bytes_accessed=2 * B * S * D * itemsize + 2 * S * D * 4),
    )(x_flat, cos_tab, sin_tab)

    return out_flat.reshape(B, S, D)


def rope_reference(x):
    """Pure-JAX transcription of the PyTorch apply_rope for verification."""
    B, S, D = x.shape
    token_idx = jnp.arange(S, dtype=jnp.float32)[:, None]
    positions = jnp.arange(0, D, 2, dtype=jnp.float32)[None, :]
    theta = jnp.power(10000.0, -2.0 * positions / D)
    angles = token_idx * theta
    xr = x.reshape(B, S, D // 2, 2)
    cos_a = jnp.cos(angles)
    sin_a = jnp.sin(angles)
    out = jnp.stack(
        [xr[..., 0] * cos_a - xr[..., 1] * sin_a,
         xr[..., 1] * cos_a + xr[..., 0] * sin_a],
        axis=-1,
    )
    return out.reshape(B, S, D)


if __name__ == "__main__":
    key = jax.random.PRNGKey(0)
    B, S, D = 2, 8, 32   # small shapes consistent with (batch, block_size, embeddings_dims)
    x = jax.random.normal(key, (B, S, D), dtype=jnp.float32)

    out = rotary_embeddings(x)
    out = jax.block_until_ready(out)

    ref = rope_reference(x)
    assert out.shape == (B, S, D)
    assert out.dtype == x.dtype
    assert jnp.allclose(out, ref, atol=1e-5, rtol=1e-5)

    print("KERNEL_OK")
</pallas_src>

<mosaic_0001>
module attributes {stable_mosaic.version = 11 : i64} {
  func.func @rope_kernel(%arg0: i32, %arg1: i32, %arg2: memref<1x1x256xf32, #tpu.memory_space<vmem>>, %arg3: memref<1x256xf32, #tpu.memory_space<vmem>>, %arg4: memref<1x256xf32, #tpu.memory_space<vmem>>, %arg5: memref<1x1x256xf32, #tpu.memory_space<vmem>>) attributes {dimension_semantics = [#tpu.dimension_semantics<arbitrary>, #tpu.dimension_semantics<parallel>], iteration_bounds = array<i64: 1, 2>, scalar_prefetch = 0 : i64, scratch_operands = 0 : i64, tpu.core_type = #tpu.core_type<tc>, window_params = [{transform_indices = @transform_0, window_bounds = array<i64: 1, 1, 256>}, {transform_indices = @transform_1, window_bounds = array<i64: 1, 256>}, {transform_indices = @transform_2, window_bounds = array<i64: 1, 256>}, {transform_indices = @transform_3, window_bounds = array<i64: 1, 1, 256>}]} {
    %c0 = arith.constant 0 : index
    %c0_0 = arith.constant 0 : index
    %c0_1 = arith.constant 0 : index
    %0 = vector.load %arg2[%c0, %c0_0, %c0_1] : memref<1x1x256xf32, #tpu.memory_space<vmem>>, vector<1x1x256xf32>
    %1 = vector.shape_cast %0 : vector<1x1x256xf32> to vector<1x256xf32>
    %2 = vector.extract_strided_slice %1 {offsets = [0, 1], sizes = [1, 255], strides = [1, 1]} : vector<1x256xf32> to vector<1x255xf32>
    %3 = vector.extract_strided_slice %1 {offsets = [0, 0], sizes = [1, 1], strides = [1, 1]} : vector<1x256xf32> to vector<1x1xf32>
    %4 = tpu.concatenate %2, %3 in 1 : vector<1x255xf32>, vector<1x1xf32> -> vector<1x256xf32>
    %5 = vector.extract_strided_slice %1 {offsets = [0, 255], sizes = [1, 1], strides = [1, 1]} : vector<1x256xf32> to vector<1x1xf32>
    %6 = vector.extract_strided_slice %1 {offsets = [0, 0], sizes = [1, 255], strides = [1, 1]} : vector<1x256xf32> to vector<1x255xf32>
    %7 = tpu.concatenate %5, %6 in 1 : vector<1x1xf32>, vector<1x255xf32> -> vector<1x256xf32>
    %8 = tpu.iota {dimensions = array<i32: 1>} : vector<1x256xi32>
    %c2_i32 = arith.constant 2 : i32
    %c0_i32 = arith.constant 0 : i32
    %9 = arith.cmpi eq, %c2_i32, %c0_i32 : i32
    %c1_i32 = arith.constant 1 : i32
    %10 = arith.select %9, %c1_i32, %c2_i32 : i32
    %11 = vector.broadcast %10 : i32 to vector<1x256xi32>
    %12 = arith.remsi %8, %11 : vector<1x256xi32>
    %c0_i32_2 = arith.constant 0 : i32
    %13 = vector.broadcast %c0_i32_2 : i32 to vector<1x256xi32>
    %14 = arith.cmpi ne, %12, %13 : vector<1x256xi32>
    %c0_i32_3 = arith.constant 0 : i32
    %15 = vector.broadcast %c0_i32_3 : i32 to vector<1x256xi32>
    %16 = arith.cmpi slt, %12, %15 : vector<1x256xi32>
    %c0_i32_4 = arith.constant 0 : i32
    %17 = arith.cmpi slt, %10, %c0_i32_4 : i32
    %18 = vector.broadcast %17 : i1 to vector<1x256xi1>
    %19 = vector.broadcast %18 : vector<1x256xi1> to vector<1x256xi1>
    %20 = arith.xori %16, %19 : vector<1x256xi1>
    %21 = arith.andi %20, %14 : vector<1x256xi1>
    %22 = vector.broadcast %10 : i32 to vector<1x256xi32>
    %23 = arith.addi %12, %22 : vector<1x256xi32>
    %24 = arith.select %21, %23, %12 : vector<1x256xi1>, vector<1x256xi32>
    %c0_i32_5 = arith.constant 0 : i32
    %25 = vector.broadcast %c0_i32_5 : i32 to vector<1x256xi32>
    %26 = arith.cmpi eq, %24, %25 : vector<1x256xi32>
    %27 = arith.select %26, %4, %7 : vector<1x256xi1>, vector<1x256xf32>
    %c0_6 = arith.constant 0 : index
    %c0_7 = arith.constant 0 : index
    %28 = vector.load %arg3[%c0_6, %c0_7] : memref<1x256xf32, #tpu.memory_space<vmem>>, vector<1x256xf32>
    %29 = arith.mulf %1, %28 : vector<1x256xf32>
    %c0_8 = arith.constant 0 : index
    %c0_9 = arith.constant 0 : index
    %30 = vector.load %arg4[%c0_8, %c0_9] : memref<1x256xf32, #tpu.memory_space<vmem>>, vector<1x256xf32>
    %31 = arith.mulf %27, %30 : vector<1x256xf32>
    %32 = arith.addf %29, %31 : vector<1x256xf32>
    %c0_10 = arith.constant 0 : index
    %c0_11 = arith.constant 0 : index
    %c0_12 = arith.constant 0 : index
    %33 = vector.load %arg5[%c0_10, %c0_11, %c0_12] : memref<1x1x256xf32, #tpu.memory_space<vmem>>, vector<1x1x256xf32>
    %34 = vector.shape_cast %33 : vector<1x1x256xf32> to vector<1x256xf32>
    %35 = vector.shape_cast %32 : vector<1x256xf32> to vector<1x1x256xf32>
    tpu.vector_store %arg5[%c0_10, %c0_11, %c0_12], %35 {strides = array<i32>} : memref<1x1x256xf32, #tpu.memory_space<vmem>>, vector<1x1x256xf32>,
    return
  }
  func.func @transform_0(%arg0: i32, %arg1: i32) -> (i32, i32, i32) {
    %c0_i32 = arith.constant 0 : i32
    %c0_i32_0 = arith.constant 0 : i32
    return %arg1, %arg0, %c0_i32 : i32, i32, i32
  }
  func.func @transform_1(%arg0: i32, %arg1: i32) -> (i32, i32) {
    %c0_i32 = arith.constant 0 : i32
    %c0_i32_0 = arith.constant 0 : i32
    return %arg0, %c0_i32 : i32, i32
  }
  func.func @transform_2(%arg0: i32, %arg1: i32) -> (i32, i32) {
    %c0_i32 = arith.constant 0 : i32
    %c0_i32_0 = arith.constant 0 : i32
    return %arg0, %c0_i32 : i32, i32
  }
  func.func @transform_3(%arg0: i32, %arg1: i32) -> (i32, i32, i32) {
    %c0_i32 = arith.constant 0 : i32
    %c0_i32_0 = arith.constant 0 : i32
    return %arg1, %arg0, %c0_i32 : i32, i32, i32
  }
}

</mosaic_0001>

<llo_original>
// kernel: tpu_custom_call.1
$region0: #{tpu_custom_call.1}
  #allocation0 [shape = 'u32[]', space=smem, size = 0x4, offset = 0x4, fixed_abs, tag = 'smem constant byte address 0x4 - core index']
  #allocation1 [shape = 'u32[144,128]{1,0:T(1,128)}', space=vmem, size = 0x12000, scoped, tag = 'internal scratch']
  %s0 = inlined_call_operand.hbm [shape: f32[2,1,256], index: 0, kind: input, shape index: {}]
  %s1 = inlined_call_operand.vmem [shape: f32[1,256], index: 1, kind: input, shape index: {}]
  %s2 = inlined_call_operand.vmem [shape: f32[1,256], index: 2, kind: input, shape index: {}]
  %s3 = inlined_call_operand.hbm [shape: f32[2,1,256], index: 3, kind: output, shape index: {}]
  %s4 = sld [smem:[#allocation0]]
  $region49: #{tpu_custom_call.1} parent=0
    _
  %s6 = ssub.s32 1, %s4
  %s7 = scalar_select 0, %s6, %s4
  $region1: #{tpu_custom_call.1} parent=0
    #allocation2 [shape = 'u8[2048]{0}', space=vmem, size = 0x800, scoped, tag = 'input window, operand 0']
    #allocation3 [shape = 's32[2]{0}', space=sflag, size = 0x8, scoped, tag = 'scoped memory for tpu_custom_call.1']
    #allocation4 [shape = 's32[2]{0}', space=sflag, size = 0x8, scoped, tag = 'scoped memory for tpu_custom_call.1']
    #allocation5 [shape = 'u8[2048]{0}', space=vmem, size = 0x800, scoped, tag = 'output window, operand 0']
    %8 = vsyncpa [#allocation3], 0
    %s9 = scalar_lea.sflag [#allocation3], 1
    %10 = vsyncpa %s9, 0
    %11 = vsyncpa [#allocation4], 0
    %s12 = scalar_lea.sflag [#allocation4], 1
    %13 = vsyncpa %s12, 0
    loop: start=0, step=1, limit=4
    $region2: #{tpu_custom_call.1} parent=1 // loop_pre_header
      _
    $region3: #{tpu_custom_call.1} parent=1 // loop_header
      %s15 = sphi 0, %s19
      %p16 = scmp.ge.s32.totalorder %s15, 4
      %s22 = sphi 0, %s34
      %s23 = sphi 0, %s30
      %s24 = sphi 0, %s22
      %s25 = sphi 0, %s23
      %s26 = sphi 0, %s24
      %s27 = sphi 0, %s25
      %s39 = sphi 0, %s41
      %s42 = sphi 0, %s39
      %s43 = sphi 0, %s42
      %s59 = sphi 0, %s43
      %s65 = sphi 0, %s67
      %s68 = sphi 0, %s65
      %s69 = sphi 0, %s68
      %s85 = sphi 0, %s69
      %s91 = sphi 0, %s93
      %s94 = sphi 0, %s91
      %s95 = sphi 0, %s94
      %s111 = sphi 0, %s95
      %s119 = sphi 0, %s121
      %s122 = sphi 0, %s119
      %s123 = sphi 0, %s122
      %s139 = sphi 0, %s123
    $region4: #{tpu_custom_call.1} parent=1 // loop_header_branch
      %18 = sbr.rel (%p16) target = $region8
    $region5: #{tpu_custom_call.1} parent=1 // loop_body
      %s20 = ssub.s32 %s15, 1
      %s21 = ssub.s32 %s15, 2
      %s28 = sadd.s32 1, %s23
      %p29 = scmp.ge.s32.totalorder %s28, 2
      %s30 = scalar_select %p29, 0, %s28
      %s31 = sadd.s32 1, %s22
      %s32 = scalar_select %p29, %s31, %s22
      %p33 = scmp.ge.s32.totalorder %s32, 1
      %s34 = scalar_select %p33, 0, %s32
      %s35 = ssub.s32 %s23, %s30
      %s36 = ssub.s32 %s22, %s34
      %s37 = sor.u32 %s35, %s36
      %p38 = scmp.eq.s32.totalorder %s37, 0
      %s40 = sadd.s32 %s39, 1
      %s41 = scalar_select %p38, %s39, %s40
      %p44 = pneg %p38
      %p45 = scmp.eq.s32.totalorder %s15, 1
      %p46 = por %p44, %p45
      %p47 = scmp.ne.s32.totalorder %s39, %s42
      %p48 = scmp.eq.s32.totalorder %s15, 0
      %p49 = por %p47, %p48
      %p50 = scmp.ne.s32.totalorder %s39, %s42
      %p51 = scmp.eq.s32.totalorder %s20, 1
      %p52 = por %p50, %p51
      %p53 = scmp.ne.s32.totalorder %s42, %s43
      %p54 = scmp.eq.s32.totalorder %s20, 0
      %p55 = por %p53, %p54
      %p56 = scmp.ne.s32.totalorder %s42, %s43
      %p57 = scmp.eq.s32.totalorder %s21, 1
      %p58 = por %p56, %p57
      %p60 = scmp.ne.s32.totalorder %s43, %s59
      %p61 = scmp.eq.s32.totalorder %s21, 0
      %p62 = por %p60, %p61
      %s63 = ssub.s32 %s22, %s34
      %p64 = scmp.eq.s32.totalorder %s63, 0
      %s66 = sadd.s32 %s65, 1
      %s67 = scalar_select %p64, %s65, %s66
      %p70 = pneg %p64
      %p71 = scmp.eq.s32.totalorder %s15, 1
      %p72 = por %p70, %p71
      %p73 = scmp.ne.s32.totalorder %s65, %s68
      %p74 = scmp.eq.s32.totalorder %s15, 0
      %p75 = por %p73, %p74
      %p76 = scmp.ne.s32.totalorder %s65, %s68
      %p77 = scmp.eq.s32.totalorder %s20, 1
      %p78 = por %p76, %p77
      %p79 = scmp.ne.s32.totalorder %s68, %s69
      %p80 = scmp.eq.s32.totalorder %s20, 0
      %p81 = por %p79, %p80
      %p82 = scmp.ne.s32.totalorder %s68, %s69
      %p83 = scmp.eq.s32.totalorder %s21, 1
      %p84 = por %p82, %p83
      %p86 = scmp.ne.s32.totalorder %s69, %s85
      %p87 = scmp.eq.s32.totalorder %s21, 0
      %p88 = por %p86, %p87
      %s89 = ssub.s32 %s22, %s34
      %p90 = scmp.eq.s32.totalorder %s89, 0
      %s92 = sadd.s32 %s91, 1
      %s93 = scalar_select %p90, %s91, %s92
      %p96 = pneg %p90
      %p97 = scmp.eq.s32.totalorder %s15, 1
      %p98 = por %p96, %p97
      %p99 = scmp.ne.s32.totalorder %s91, %s94
      %p100 = scmp.eq.s32.totalorder %s15, 0
      %p101 = por %p99, %p100
      %p102 = scmp.ne.s32.totalorder %s91, %s94
      %p103 = scmp.eq.s32.totalorder %s20, 1
      %p104 = por %p102, %p103
      %p105 = scmp.ne.s32.totalorder %s94, %s95
      %p106 = scmp.eq.s32.totalorder %s20, 0
      %p107 = por %p105, %p106
      %p108 = scmp.ne.s32.totalorder %s94, %s95
      %p109 = scmp.eq.s32.totalorder %s21, 1
      %p110 = por %p108, %p109
      %p112 = scmp.ne.s32.totalorder %s95, %s111
      %p113 = scmp.eq.s32.totalorder %s21, 0
      %p114 = por %p112, %p113
      %s115 = ssub.s32 %s23, %s30
      %s116 = ssub.s32 %s22, %s34
      %s117 = sor.u32 %s115, %s116
      %p118 = scmp.eq.s32.totalorder %s117, 0
      %s120 = sadd.s32 %s119, 1
      %s121 = scalar_select %p118, %s119, %s120
      %p124 = pneg %p118
      %p125 = scmp.eq.s32.totalorder %s15, 1
      %p126 = por %p124, %p125
      %p127 = scmp.ne.s32.totalorder %s119, %s122
      %p128 = scmp.eq.s32.totalorder %s15, 0
      %p129 = por %p127, %p128
      %p130 = scmp.ne.s32.totalorder %s119, %s122
      %p131 = scmp.eq.s32.totalorder %s20, 1
      %p132 = por %p130, %p131
      %p133 = scmp.ne.s32.totalorder %s122, %s123
      %p134 = scmp.eq.s32.totalorder %s20, 0
      %p135 = por %p133, %p134
      %p136 = scmp.ne.s32.totalorder %s122, %s123
      %p137 = scmp.eq.s32.totalorder %s21, 1
      %p138 = por %p136, %p137
      %p140 = scmp.ne.s32.totalorder %s123, %s139
      %p141 = scmp.eq.s32.totalorder %s21, 0
      %p142 = por %p140, %p141
      %p143 = scmp.le.s32.totalorder 1, %s15
      %p144 = scmp.lt.s32.totalorder %s15, 3
      %p145 = pnand %p143, %p144
      %p146 = pneg %p145
      // Predicated region
      $region9: #{tpu_custom_call.1} parent=5 // pred_check
        _
      $region10: #{tpu_custom_call.1} parent=5 // pred_check_branch
        %148 = sbr.rel (%p145) target = $region12
      $region11: #{tpu_custom_call.1} parent=5 // pred_region
        %s149 = ssub.s32 %s15, 1
        // Predicated region
        $region13: #{tpu_custom_call.1} parent=11 // pred_check
          %p150 = pneg %p81
        $region14: #{tpu_custom_call.1} parent=11 // pred_check_branch
          %152 = sbr.rel (%p150) target = $region16
        $region15: #{tpu_custom_call.1} parent=11 // pred_region
          %p153 = scmp.lt.s32.totalorder %s24, 0
          %s154 = scalar_select %p153, %s24, 0
          %s155 = smul.addr %s154, 2
          %s156 = scalar_lea.vmem %s1, %s155
        $region16: #{tpu_custom_call.1} parent=11 // pred_fallthru
          _
        // Predicated region
        $region17: #{tpu_custom_call.1} parent=11 // pred_check
          %p157 = pneg %p107
        $region18: #{tpu_custom_call.1} parent=11 // pred_check_branch
          %159 = sbr.rel (%p157) target = $region20
        $region19: #{tpu_custom_call.1} parent=11 // pred_region
          %p160 = scmp.lt.s32.totalorder %s24, 0
          %s161 = scalar_select %p160, %s24, 0
          %s162 = smul.addr %s161, 2
          %s163 = scalar_lea.vmem %s2, %s162
        $region20: #{tpu_custom_call.1} parent=11 // pred_fallthru
          _
      $region12: #{tpu_custom_call.1} parent=5 // pred_fallthru
        _
      %p164 = scmp.lt.s32.totalorder %s15, 2
      // Predicated region
      $region21: #{tpu_custom_call.1} parent=5 // pred_check
        %p165 = pneg %p164
      $region22: #{tpu_custom_call.1} parent=5 // pred_check_branch
        %167 = sbr.rel (%p165) target = $region24
      $region23: #{tpu_custom_call.1} parent=5 // pred_region
        // Predicated region
        $region25: #{tpu_custom_call.1} parent=23 // pred_check
          %p168 = pneg %p49
        $region26: #{tpu_custom_call.1} parent=23 // pred_check_branch
          %170 = sbr.rel (%p168) target = $region28
        $region27: #{tpu_custom_call.1} parent=23 // pred_region
          %s171 = sand.u32 %s39, 1
          %s172 = scalar_lea.sflag [#allocation3], %s171
          %s173 = sand.u32 %s39, 1
          %s174 = smul.addr %s173, 2
          %s175 = scalar_lea.vmem [#allocation2], %s174
          %s177 = ssub.s32 32, 32
          %178 = vsyncadd %s172, %s177
          %s179 = smul.addr %s22, 2
          %s180 = smul.addr %s23, 2
          %s181 = sadd.s32 %s179, %s180
          %s182 = smul.addr %s181, 16
          %s183 = scalar_lea.hbm %s0, %s182
          %s185 = sshll.u32 %s175, 4
          %s186 = int_to_ptr.vmem [resolvable:$true] %s185
          %188 = dma.hbm_to_vmem [thread:$0]  %s183, 32, %s186, %s172
        $region28: #{tpu_custom_call.1} parent=23 // pred_fallthru
          _
      $region24: #{tpu_custom_call.1} parent=5 // pred_fallthru
        _
      %p189 = scmp.le.s32.totalorder 1, %s15
      %p190 = scmp.lt.s32.totalorder %s15, 3
      %p191 = pnand %p189, %p190
      %p192 = pneg %p191
      // Predicated region
      $region29: #{tpu_custom_call.1} parent=5 // pred_check
        _
      $region30: #{tpu_custom_call.1} parent=5 // pred_check_branch
        %194 = sbr.rel (%p191) target = $region32
      $region31: #{tpu_custom_call.1} parent=5 // pred_region
        %s195 = ssub.s32 %s15, 1
        %s196 = sand.u32 %s42, 1
        %s197 = scalar_lea.sflag [#allocation3], %s196
        %s198 = sand.u32 %s42, 1
        %s199 = smul.addr %s198, 2
        %s200 = scalar_lea.vmem [#allocation2], %s199
        // Predicated region
        $region33: #{tpu_custom_call.1} parent=31 // pred_check
          %p201 = pneg %p55
        $region34: #{tpu_custom_call.1} parent=31 // pred_check_branch
          %203 = sbr.rel (%p201) target = $region36
        $region35: #{tpu_custom_call.1} parent=31 // pred_region
          %204 = dma.done %s197, 32
        $region36: #{tpu_custom_call.1} parent=31 // pred_fallthru
          _
        %s205 = sand.u32 %s42, 1
        %s206 = scalar_lea.sflag [#allocation3], %s205
        %s207 = sand.u32 %s42, 1
        %s208 = smul.addr %s207, 2
        %s209 = scalar_lea.vmem [#allocation2], %s208
        %p210 = pneg %p55
        %p211 = pneg %p52
        %p212 = scmp.lt.s32.totalorder %s24, 0
        %s213 = scalar_select %p212, %s24, 0
        %s214 = smul.addr %s213, 2
        %s215 = scalar_lea.vmem %s1, %s214
        %p216 = pneg %p81
        %p217 = pneg %p78
        %p218 = scmp.lt.s32.totalorder %s24, 0
        %s219 = scalar_select %p218, %s24, 0
        %s220 = smul.addr %s219, 2
        %s221 = scalar_lea.vmem %s2, %s220
        %p222 = pneg %p107
        %p223 = pneg %p104
        %p224 = pneg %p135
        %p225 = pneg %p132
        %s226 = sand.u32 %s122, 1
        %s227 = scalar_lea.sflag [#allocation4], %s226
        %s228 = sand.u32 %s122, 1
        %s229 = smul.addr %s228, 2
        %s230 = scalar_lea.vmem [#allocation5], %s229
        %p231 = scmp.lt.s32.totalorder %s24, 0
        %s232 = scalar_select %p231, %s24, 0
        %s233 = smul.addr %s232, 2
        %s234 = scalar_lea.vmem %s1, %s233
        %p235 = scmp.lt.s32.totalorder %s24, 0
        %s236 = scalar_select %p235, %s24, 0
        %s237 = smul.addr %s236, 2
        %s238 = scalar_lea.vmem %s2, %s237
        %v239 = vld [vmem:[%s200] sm:$0x3]
        %v241 = vlaneseq
        %v242 = vshrl.u32 %v241, 7
        %v243 = vsub.s32 0, %v242
        %v244 = vrot.slane %v239, %v243
        %v245 = vlaneseq
        %v246 = vshrl.u32 %v245, 7
        %v247 = vsub.s32 1, %v246
        %v248 = vrot.slane %v239, %v247
        %249 = vrot.lane.b32.xlu0 %v244, 127
        %v250 = vpop.permute.xlu0 %249
        %251 = vrot.lane.b32.xlu0 %v248, 127
        %v252 = vpop.permute.xlu0 %251
        %vm253 = vcmask 1039360
        %v254 = vsel %vm253, %v250, %v252
        %v258 = vsel %vm253, %v252, %v250
        %259 = vrot.lane.b32.xlu0 %v248, 1
        %v260 = vpop.permute.xlu0 %259
        %262 = vrot.lane.b32.xlu0 %v244, 1
        %v263 = vpop.permute.xlu0 %262
        %vm264 = vcmask 7168
        %v265 = vsel %vm264, %v263, %v260
        %v268 = vsel %vm264, %v260, %v263
        %v269 = vlaneseq
        %v270 = vand.u32 %v269, 127
        %v271 = vadd.s32 %v270, 128
        %vm272 = vcmp.lt.s32.totalorder %v270, 0
        %v273 = vsub.s32 0, %v270
        %v274 = vsel %vm272, %v273, %v270
        %v275 = vshrl.u32 %v274, 1
        %v276 = vand.u32 %v274, 1
        %v277 = vsub.s32 0, %v276
        %v278 = vsel %vm272, %v277, %v276
        %vm279 = vcmp.lt.s32.totalorder %v271, 0
        %v280 = vsub.s32 0, %v271
        %v281 = vsel %vm279, %v280, %v271
        %v282 = vshrl.u32 %v281, 1
        %v283 = vand.u32 %v281, 1
        %v284 = vsub.s32 0, %v283
        %v285 = vsel %vm279, %v284, %v283
        %vm286 = vcmp.ne.s32.totalorder %v278, 0
        %vm287 = vcmp.ne.s32.totalorder %v285, 0
        %vm288 = vcmp.lt.s32.totalorder %v278, 0
        %vm289 = vcmp.lt.s32.totalorder %v285, 0
        %vm290 = vmand %vm288, %vm286
        %vm291 = vmand %vm289, %vm287
        %v292 = vadd.s32 %v278, 2
        %v293 = vadd.s32 %v285, 2
        %v294 = vsel %vm290, %v292, %v278
        %v295 = vsel %vm291, %v293, %v285
        %vm296 = vcmp.eq.s32.totalorder %v294, 0
        %vm297 = vcmp.eq.s32.totalorder %v295, 0
        %v298 = vsel %vm296, %v254, %v268
        %v299 = vsel %vm297, %v258, %v265
        %v300 = vld [vmem:[%s234] sm:$0x3]
        %v301 = vmul.f32 %v239, %v300
        %v302 = vld [vmem:[%s238] sm:$0x3]
        %v304 = vlaneseq
        %v305 = vshrl.u32 %v304, 7
        %v306 = vsub.s32 0, %v305
        %v307 = vrot.slane %v302, %v306
        %v308 = vlaneseq
        %v309 = vshrl.u32 %v308, 7
        %v310 = vsub.s32 1, %v309
        %v311 = vrot.slane %v302, %v310
        %v314 = vmul.f32 %v298, %v307
        %v315 = vmul.f32 %v299, %v311
        %v318 = vcombine.low %v314, %v315
        %v320 = vunpack.c.l.s4 1966171168
        %v321 = vunpack.c.0.s8 %v320
        %v322 = vlaneseq
        %v323 = vshrl.u32 %v322, 7
        %v324 = vsub.s32 %v321, %v323
        %v325 = vrot.slane %v318, %v324
        %v327 = vunpack.c.l.s4 1966171168
        %v328 = vunpack.c.0.s8 %v327
        %v329 = vlaneseq
        %v330 = vshrl.u32 %v329, 7
        %v331 = vsub.s32 %v328, %v330
        %v332 = vrot.slane %v325, %v331
        %v334 = vadd.f32 %v301, %v332
        %v335 = vlaneseq
        %vm336 = vcmp.ge.s32.totalorder %v335, 0
        %vm337 = vcmp.lt.s32.totalorder %v335, 256
        %vm338 = vmand %vm336, %vm337
        %339 = vst.msk [vmem:[%s230] sm:$0x3] %vm338, %v334
        %s340 = sand.u32 %s122, 1
        %s341 = scalar_lea.sflag [#allocation4], %s340
        %s342 = sand.u32 %s122, 1
        %s343 = smul.addr %s342, 2
        %s344 = scalar_lea.vmem [#allocation5], %s343
        // Predicated region
        $region37: #{tpu_custom_call.1} parent=31 // pred_check
          %p345 = pneg %p132
        $region38: #{tpu_custom_call.1} parent=31 // pred_check_branch
          %347 = sbr.rel (%p345) target = $region40
        $region39: #{tpu_custom_call.1} parent=31 // pred_region
          %s349 = ssub.s32 32, 32
          %350 = vsyncadd %s341, %s349
          %s351 = smul.addr %s24, 2
          %s352 = smul.addr %s25, 2
          %s353 = sadd.s32 %s351, %s352
          %s354 = smul.addr %s353, 16
          %s355 = scalar_lea.hbm %s3, %s354
          %s357 = sshll.u32 %s344, 4
          %s358 = int_to_ptr.vmem [resolvable:$true] %s357
          %360 = dma.vmem_to_hbm [thread:$0]  %s358, 32, %s355, %s341
        $region40: #{tpu_custom_call.1} parent=31 // pred_fallthru
          _
      $region32: #{tpu_custom_call.1} parent=5 // pred_fallthru
        _
      %p361 = scmp.le.s32.totalorder 2, %s15
      // Predicated region
      $region41: #{tpu_custom_call.1} parent=5 // pred_check
        %p362 = pneg %p361
      $region42: #{tpu_custom_call.1} parent=5 // pred_check_branch
        %364 = sbr.rel (%p362) target = $region44
      $region43: #{tpu_custom_call.1} parent=5 // pred_region
        %s365 = ssub.s32 %s15, 2
        // Predicated region
        $region45: #{tpu_custom_call.1} parent=43 // pred_check
          %p366 = pneg %p138
        $region46: #{tpu_custom_call.1} parent=43 // pred_check_branch
          %368 = sbr.rel (%p366) target = $region48
        $region47: #{tpu_custom_call.1} parent=43 // pred_region
          %s369 = sand.u32 %s123, 1
          %s370 = scalar_lea.sflag [#allocation4], %s369
          %s371 = sand.u32 %s123, 1
          %s372 = smul.addr %s371, 2
          %s373 = scalar_lea.vmem [#allocation5], %s372
          %374 = dma.done %s370, 32
        $region48: #{tpu_custom_call.1} parent=43 // pred_fallthru
          _
      $region44: #{tpu_custom_call.1} parent=5 // pred_fallthru
        _
    $region6: #{tpu_custom_call.1} parent=1 // loop_footer
      %s19 = sadd.s32 1, %s15
    $region7: #{tpu_custom_call.1} parent=1 // loop_footer_branch
      %14 = sbr.rel target = $region3
    $region8: #{tpu_custom_call.1} parent=1 // loop_exit
      _
    %375 = vsyncpa [#allocation3], 1
    %s376 = scalar_lea.sflag [#allocation3], 1
    %377 = vsyncpa %s376, 1
    %378 = vsyncpa [#allocation4], 1
    %s379 = scalar_lea.sflag [#allocation4], 1
    %380 = vsyncpa %s379, 1

</llo_original>
